<compile_context>
chip_gen: v5e
topology: v5e:2x2
jax: 0.10.0
libtpu: 0.0.40
codegen_flags: <defaults>
</compile_context>

<pallas_src>
import jax
import jax.numpy as jnp
from jax.experimental import pallas as pl
from jax.experimental.pallas import tpu as pltpu

IN_DIM = 784
HID_DIM = 120
OUT_DIM = 10
HID_PAD = 128
OUT_PAD = 128
MAX_TB = 1024  # batch-tile rows (see VMEM accounting in header comment)


def _round_up(x, m):
    return (x + m - 1) // m * m


def _cdiv(a, b):
    return (a + b - 1) // b


def mlp_kernel(x_ref, w1_ref, b1_ref, w2_ref, b2_ref, o_ref):
    # x_ref:  [TB, 784]  f32  (cast to bf16 in-kernel; no wrapper copy)
    # w1_ref: [784, 128] bf16   b1_ref: [1, 128] f32
    # w2_ref: [128, 128] bf16   b2_ref: [1, 128] f32
    # o_ref:  [TB, 128]  f32
    x = x_ref[...].astype(jnp.bfloat16)
    h = jnp.dot(x, w1_ref[...], preferred_element_type=jnp.float32)
    h = jnp.maximum(h + b1_ref[...], 0.0)                        # bias + ReLU (f32)
    y = jnp.dot(h.astype(jnp.bfloat16), w2_ref[...],
                preferred_element_type=jnp.float32)
    o_ref[...] = jnp.exp(y + b2_ref[...])                        # torch.exp


def pad_params(w1, b1, w2, b2):
    """Pad hidden/output dims to 128 lanes; pad regions are zero so the math
    in the live region is unchanged. Weights stored bf16, biases f32."""
    w1p = jnp.zeros((IN_DIM, HID_PAD), jnp.bfloat16)
    w1p = w1p.at[:, :HID_DIM].set(w1.astype(jnp.bfloat16))
    b1p = jnp.zeros((1, HID_PAD), jnp.float32)
    b1p = b1p.at[:, :HID_DIM].set(b1.reshape(1, HID_DIM).astype(jnp.float32))
    w2p = jnp.zeros((HID_PAD, OUT_PAD), jnp.bfloat16)
    w2p = w2p.at[:HID_DIM, :OUT_DIM].set(w2.astype(jnp.bfloat16))
    b2p = jnp.zeros((1, OUT_PAD), jnp.float32)
    b2p = b2p.at[:, :OUT_DIM].set(b2.reshape(1, OUT_DIM).astype(jnp.float32))
    return w1p, b1p, w2p, b2p


def mlp_forward(x, w1p, b1p, w2p, b2p):
    """x: [B, C, H, W] (NCHW) or already-flat [B, 784]. Params pre-padded by
    pad_params(). Returns [B, 10] float32."""
    B = x.shape[0]
    x_flat = x.reshape(B, -1)  # contiguous reshape: metadata only, no HBM copy
    assert x_flat.shape[1] == IN_DIM

    # Tile selection:
    #  * no padding of B; the last block may be partial (masked on write).
    #  * at least 2 grid steps (even count when possible) so both v7x
    #    TensorCores get work; cap at MAX_TB for VMEM / pipelining.
    n_tiles = max(2, _cdiv(B, MAX_TB))
    n_tiles = _round_up(n_tiles, 2)
    TB = min(MAX_TB, _round_up(_cdiv(B, n_tiles), 8))
    grid = pl.cdiv(B, TB)

    out = pl.pallas_call(
        mlp_kernel,
        out_shape=jax.ShapeDtypeStruct((B, OUT_PAD), jnp.float32),
        grid_spec=pl.GridSpec(
            grid=(grid,),
            in_specs=[
                pl.BlockSpec((TB, IN_DIM), lambda i: (i, 0)),        # x tile (f32)
                pl.BlockSpec((IN_DIM, HID_PAD), lambda i: (0, 0)),   # w1 resident
                pl.BlockSpec((1, HID_PAD), lambda i: (0, 0)),        # b1 resident
                pl.BlockSpec((HID_PAD, OUT_PAD), lambda i: (0, 0)),  # w2 resident
                pl.BlockSpec((1, OUT_PAD), lambda i: (0, 0)),        # b2 resident
            ],
            out_specs=pl.BlockSpec((TB, OUT_PAD), lambda i: (i, 0)),
        ),
        compiler_params=pltpu.CompilerParams(
            dimension_semantics=("parallel",),  # shard batch tiles across TCs (v7x)
        ),
    )(x_flat, w1p, b1p, w2p, b2p)

    # Only the first 10 lanes are live; the zero-padded lanes (exp(0)=1) are
    # never observed downstream.
    return out[:, :OUT_DIM]


def init_params(key):
    """Deterministic params matching nn.Linear(784,120) / nn.Linear(120,10),
    stored pre-transposed as (in, out). PyTorch default U(-1/sqrt(fan_in), ...)."""
    k1, k2, k3, k4 = jax.random.split(key, 4)
    bound1 = 1.0 / jnp.sqrt(float(IN_DIM))
    bound2 = 1.0 / jnp.sqrt(float(HID_DIM))
    w1 = jax.random.uniform(k1, (IN_DIM, HID_DIM), jnp.float32, -bound1, bound1)
    b1 = jax.random.uniform(k2, (1, HID_DIM), jnp.float32, -bound1, bound1)
    w2 = jax.random.uniform(k3, (HID_DIM, OUT_DIM), jnp.float32, -bound2, bound2)
    b2 = jax.random.uniform(k4, (1, OUT_DIM), jnp.float32, -bound2, bound2)
    return w1, b1, w2, b2


if __name__ == "__main__":
    key = jax.random.PRNGKey(0)
    kx, kp = jax.random.split(key)

    # Small MNIST-like batch: [2, 1, 28, 28] -> flatten(1) -> [2, 784]
    x = jax.random.normal(kx, (2, 1, 28, 28), dtype=jnp.float32)
    w1, b1, w2, b2 = init_params(kp)
    w1p, b1p, w2p, b2p = pad_params(w1, b1, w2, b2)

    out = mlp_forward(x, w1p, b1p, w2p, b2p)
    out = jax.block_until_ready(out)

    # Reference in plain JAX, following the same bf16-operand / f32-accumulate
    # path as the kernel.
    x_flat = x.reshape(x.shape[0], -1)
    xq = x_flat.astype(jnp.bfloat16).astype(jnp.float32)
    w1q = w1.astype(jnp.bfloat16).astype(jnp.float32)
    w2q = w2.astype(jnp.bfloat16).astype(jnp.float32)
    h = jnp.maximum(xq @ w1q + b1, 0.0)
    hq = h.astype(jnp.bfloat16).astype(jnp.float32)
    ref = jnp.exp(hq @ w2q + b2)

    assert out.shape == (2, OUT_DIM)
    assert jnp.allclose(out, ref, rtol=1e-3, atol=1e-3), (
        f"max abs err {jnp.max(jnp.abs(out - ref))}")

    print("KERNEL_OK")
</pallas_src>

<mosaic_0001>
module attributes {stable_mosaic.version = 11 : i64} {
  func.func @mlp_kernel(%arg0: i32, %arg1: memref<8x784xf32, #tpu.memory_space<vmem>>, %arg2: memref<784x128xbf16, #tpu.memory_space<vmem>>, %arg3: memref<1x128xf32, #tpu.memory_space<vmem>>, %arg4: memref<128x128xbf16, #tpu.memory_space<vmem>>, %arg5: memref<1x128xf32, #tpu.memory_space<vmem>>, %arg6: memref<8x128xf32, #tpu.memory_space<vmem>>) attributes {dimension_semantics = [#tpu.dimension_semantics<parallel>], iteration_bounds = array<i64: 1>, scalar_prefetch = 0 : i64, scratch_operands = 0 : i64, tpu.core_type = #tpu.core_type<tc>, window_params = [{transform_indices = @transform_0, window_bounds = array<i64: 8, 784>}, {pipeline_mode = #tpu.pipeline_mode<synchronous>, transform_indices = @transform_1, window_bounds = array<i64: 784, 128>}, {pipeline_mode = #tpu.pipeline_mode<synchronous>, transform_indices = @transform_2, window_bounds = array<i64: 1, 128>}, {pipeline_mode = #tpu.pipeline_mode<synchronous>, transform_indices = @transform_3, window_bounds = array<i64: 128, 128>}, {pipeline_mode = #tpu.pipeline_mode<synchronous>, transform_indices = @transform_4, window_bounds = array<i64: 1, 128>}, {transform_indices = @transform_5, window_bounds = array<i64: 8, 128>}]} {
    %c0 = arith.constant 0 : index
    %c0_0 = arith.constant 0 : index
    %0 = vector.load %arg1[%c0, %c0_0] : memref<8x784xf32, #tpu.memory_space<vmem>>, vector<8x784xf32>
    %1 = arith.truncf %0 : vector<8x784xf32> to vector<8x784xbf16>
    %c0_1 = arith.constant 0 : index
    %c0_2 = arith.constant 0 : index
    %2 = vector.load %arg2[%c0_1, %c0_2] : memref<784x128xbf16, #tpu.memory_space<vmem>>, vector<784x128xbf16>
    %cst = arith.constant dense<0.000000e+00> : vector<8x128xf32>
    %3 = tpu.matmul %1, %2, %cst {dimension_numbers = #tpu.dot_dimension_numbers<[1], [0], [0], [1], [0, 0, 1, 1], [], []>} : vector<8x784xbf16>, vector<784x128xbf16>, vector<8x128xf32> -> vector<8x128xf32>
    %c0_3 = arith.constant 0 : index
    %c0_4 = arith.constant 0 : index
    %4 = vector.load %arg3[%c0_3, %c0_4] : memref<1x128xf32, #tpu.memory_space<vmem>>, vector<1x128xf32>
    %5 = vector.broadcast %4 : vector<1x128xf32> to vector<8x128xf32>
    %6 = arith.addf %3, %5 : vector<8x128xf32>
    %cst_5 = arith.constant 0.000000e+00 : f32
    %7 = vector.broadcast %cst_5 : f32 to vector<8x128xf32>
    %8 = arith.maximumf %6, %7 : vector<8x128xf32>
    %9 = arith.truncf %8 : vector<8x128xf32> to vector<8x128xbf16>
    %c0_6 = arith.constant 0 : index
    %c0_7 = arith.constant 0 : index
    %10 = vector.load %arg4[%c0_6, %c0_7] : memref<128x128xbf16, #tpu.memory_space<vmem>>, vector<128x128xbf16>
    %cst_8 = arith.constant dense<0.000000e+00> : vector<8x128xf32>
    %11 = tpu.matmul %9, %10, %cst_8 {dimension_numbers = #tpu.dot_dimension_numbers<[1], [0], [0], [1], [0, 0, 1, 1], [], []>} : vector<8x128xbf16>, vector<128x128xbf16>, vector<8x128xf32> -> vector<8x128xf32>
    %c0_9 = arith.constant 0 : index
    %c0_10 = arith.constant 0 : index
    %12 = vector.load %arg5[%c0_9, %c0_10] : memref<1x128xf32, #tpu.memory_space<vmem>>, vector<1x128xf32>
    %13 = vector.broadcast %12 : vector<1x128xf32> to vector<8x128xf32>
    %14 = arith.addf %11, %13 : vector<8x128xf32>
    %15 = math.exp %14 : vector<8x128xf32>
    %c0_11 = arith.constant 0 : index
    %c0_12 = arith.constant 0 : index
    %16 = vector.load %arg6[%c0_11, %c0_12] : memref<8x128xf32, #tpu.memory_space<vmem>>, vector<8x128xf32>
    tpu.vector_store %arg6[%c0_11, %c0_12], %15 {strides = array<i32>} : memref<8x128xf32, #tpu.memory_space<vmem>>, vector<8x128xf32>,
    return
  }
  func.func @transform_0(%arg0: i32) -> (i32, i32) {
    %c0_i32 = arith.constant 0 : i32
    %c0_i32_0 = arith.constant 0 : i32
    return %arg0, %c0_i32 : i32, i32
  }
  func.func @transform_1(%arg0: i32) -> (i32, i32) {
    %c0_i32 = arith.constant 0 : i32
    %c0_i32_0 = arith.constant 0 : i32
    %c0_i32_1 = arith.constant 0 : i32
    return %c0_i32, %c0_i32_0 : i32, i32
  }
  func.func @transform_2(%arg0: i32) -> (i32, i32) {
    %c0_i32 = arith.constant 0 : i32
    %c0_i32_0 = arith.constant 0 : i32
    %c0_i32_1 = arith.constant 0 : i32
    return %c0_i32, %c0_i32_0 : i32, i32
  }
  func.func @transform_3(%arg0: i32) -> (i32, i32) {
    %c0_i32 = arith.constant 0 : i32
    %c0_i32_0 = arith.constant 0 : i32
    %c0_i32_1 = arith.constant 0 : i32
    return %c0_i32, %c0_i32_0 : i32, i32
  }
  func.func @transform_4(%arg0: i32) -> (i32, i32) {
    %c0_i32 = arith.constant 0 : i32
    %c0_i32_0 = arith.constant 0 : i32
    %c0_i32_1 = arith.constant 0 : i32
    return %c0_i32, %c0_i32_0 : i32, i32
  }
  func.func @transform_5(%arg0: i32) -> (i32, i32) {
    %c0_i32 = arith.constant 0 : i32
    %c0_i32_0 = arith.constant 0 : i32
    return %arg0, %c0_i32 : i32, i32
  }
}

</mosaic_0001>

<llo_original>
// kernel: tpu_custom_call.1
$region0: #{tpu_custom_call.1}
  #allocation0 [shape = 'u32[]', space=smem, size = 0x4, offset = 0x4, fixed_abs, tag = 'smem constant byte address 0x4 - core index']
  #allocation1 [shape = 'u32[72,128]{1,0:T(1,128)}', space=vmem, size = 0x9000, scoped, tag = 'internal scratch']
  %s0 = inlined_call_operand.hbm [shape: f32[2,784], index: 0, kind: input, shape index: {}]
  %s1 = inlined_call_operand.hbm [shape: bf16[784,128], index: 1, kind: input, shape index: {}]
  %s2 = inlined_call_operand.vmem [shape: f32[1,128], index: 2, kind: input, shape index: {}]
  %s3 = inlined_call_operand.hbm [shape: bf16[128,128], index: 3, kind: input, shape index: {}]
  %s4 = inlined_call_operand.vmem [shape: f32[1,128], index: 4, kind: input, shape index: {}]
  %s5 = inlined_call_operand.hbm [shape: f32[2,128], index: 5, kind: output, shape index: {}]
  %s6 = sld [smem:[#allocation0]]
  $region42: #{tpu_custom_call.1} parent=0
    _
  %s8 = ssub.s32 1, %s6
  %s9 = scalar_select 0, %s8, %s6
  $region1: #{tpu_custom_call.1} parent=0
    #allocation2 [shape = 'u8[28672]{0}', space=vmem, size = 0x7000, scoped, tag = 'input window, operand 0, single buffered']
    #allocation3 [shape = 's32[1]{0}', space=sflag, size = 0x4, scoped, tag = 'scoped memory for tpu_custom_call.1']
    #allocation4 [shape = 's32[1]{0}', space=sflag, size = 0x4, scoped, tag = 'scoped memory for tpu_custom_call.1']
    #allocation5 [shape = 'u8[200704]{0}', space=vmem, size = 0x31000, scoped, tag = 'input window, operand 1, single buffered']
    #allocation6 [shape = 's32[1]{0}', space=sflag, size = 0x4, scoped, tag = 'scoped memory for tpu_custom_call.1']
    #allocation7 [shape = 'u8[32768]{0}', space=vmem, size = 0x8000, scoped, tag = 'input window, operand 3, single buffered']
    #allocation8 [shape = 'u8[4096]{0}', space=vmem, size = 0x1000, scoped, tag = 'output window, operand 0, single buffered']
    %10 = vsyncpa [#allocation3], 0
    %11 = vsyncpa [#allocation6], 0
    %12 = vsyncpa [#allocation4], 0
    // Predicated region
    $region2: #{tpu_custom_call.1} parent=1 // pred_check
      _
    $region3: #{tpu_custom_call.1} parent=1 // pred_check_branch
      %14 = sbr.rel (0) target = $region5
    $region4: #{tpu_custom_call.1} parent=1 // pred_region
      %16 = vsyncadd [#allocation3], 672
      %s17 = sshll.u32 %s0, 4
      %s18 = int_to_ptr.hbm [resolvable:$true] %s17
      %s19 = sshll.u32 [#allocation2], 4
      %s20 = int_to_ptr.vmem [resolvable:$true] %s19
      %25 = dma.hbm_to_vmem [thread:$0]  %s18, 224, %s20, [#allocation3], 224, 224, 14
    $region5: #{tpu_custom_call.1} parent=1 // pred_fallthru
      _
    // Predicated region
    $region6: #{tpu_custom_call.1} parent=1 // pred_check
      _
    $region7: #{tpu_custom_call.1} parent=1 // pred_check_branch
      %27 = sbr.rel (0) target = $region9
    $region8: #{tpu_custom_call.1} parent=1 // pred_region
      %29 = vsyncadd [#allocation6], 0
      %s30 = sshll.u32 %s1, 4
      %s31 = int_to_ptr.hbm [resolvable:$true] %s30
      %s32 = sshll.u32 [#allocation5], 4
      %s33 = int_to_ptr.vmem [resolvable:$true] %s32
      %38 = dma.hbm_to_vmem [thread:$0]  %s31, 6272, %s33, [#allocation6], 64, 64, 4
    $region9: #{tpu_custom_call.1} parent=1 // pred_fallthru
      _
    // Predicated region
    $region10: #{tpu_custom_call.1} parent=1 // pred_check
      _
    $region11: #{tpu_custom_call.1} parent=1 // pred_check_branch
      %40 = sbr.rel (0) target = $region13
    $region12: #{tpu_custom_call.1} parent=1 // pred_region
      _
    $region13: #{tpu_custom_call.1} parent=1 // pred_fallthru
      _
    // Predicated region
    $region14: #{tpu_custom_call.1} parent=1 // pred_check
      _
    $region15: #{tpu_custom_call.1} parent=1 // pred_check_branch
      %42 = sbr.rel (0) target = $region17
    $region16: #{tpu_custom_call.1} parent=1 // pred_region
      %44 = vsyncadd [#allocation6], 0
      %s45 = sshll.u32 %s3, 4
      %s46 = int_to_ptr.hbm [resolvable:$true] %s45
      %s47 = sshll.u32 [#allocation7], 4
      %s48 = int_to_ptr.vmem [resolvable:$true] %s47
      %53 = dma.hbm_to_vmem [thread:$0]  %s46, 1024, %s48, [#allocation6], 64, 64, 4
    $region17: #{tpu_custom_call.1} parent=1 // pred_fallthru
      _
    // Predicated region
    $region18: #{tpu_custom_call.1} parent=1 // pred_check
      _
    $region19: #{tpu_custom_call.1} parent=1 // pred_check_branch
      %55 = sbr.rel (0) target = $region21
    $region20: #{tpu_custom_call.1} parent=1 // pred_region
      _
    $region21: #{tpu_custom_call.1} parent=1 // pred_fallthru
      _
    // Predicated region
    $region22: #{tpu_custom_call.1} parent=1 // pred_check
      _
    $region23: #{tpu_custom_call.1} parent=1 // pred_check_branch
      %57 = sbr.rel (0) target = $region25
    $region24: #{tpu_custom_call.1} parent=1 // pred_region
      %59 = dma.done [#allocation3], 896
    $region25: #{tpu_custom_call.1} parent=1 // pred_fallthru
      _
    // Predicated region
    $region26: #{tpu_custom_call.1} parent=1 // pred_check
      _
    $region27: #{tpu_custom_call.1} parent=1 // pred_check_branch
      %61 = sbr.rel (0) target = $region29
    $region28: #{tpu_custom_call.1} parent=1 // pred_region
      %63 = dma.done [#allocation6], 6272
    $region29: #{tpu_custom_call.1} parent=1 // pred_fallthru
      _
    // Predicated region
    $region30: #{tpu_custom_call.1} parent=1 // pred_check
      _
    $region31: #{tpu_custom_call.1} parent=1 // pred_check_branch
      %65 = sbr.rel (0) target = $region33
    $region32: #{tpu_custom_call.1} parent=1 // pred_region
      %67 = dma.done [#allocation6], 1024
    $region33: #{tpu_custom_call.1} parent=1 // pred_fallthru
      _
    %v69 = vld [vmem:[#allocation2] sm:$0xff]
    %v70 = vld [vmem:[#allocation2 + $0x8] sm:$0x3f]
    %v71 = vld [vmem:[#allocation2 + $0xe] sm:$0xff]
    %v72 = vld [vmem:[#allocation2 + $0x16] sm:$0x3f]
    %v73 = vld [vmem:[#allocation2 + $0x1c] sm:$0xff]
    %v74 = vld [vmem:[#allocation2 + $0x24] sm:$0x3f]
    %v75 = vld [vmem:[#allocation2 + $0x2a] sm:$0xff]
    %v76 = vld [vmem:[#allocation2 + $0x32] sm:$0x3f]
    %85 = vst [vmem:[#allocation1] ss:$4 sm:$0xff] %v69
    %s86 = scalar_lea.vmem [#allocation1], 1
    %87 = vst [vmem:[%s86] ss:$4 sm:$0xff] %v71
    %s88 = scalar_lea.vmem [#allocation1], 2
    %89 = vst [vmem:[%s88] ss:$4 sm:$0xff] %v73
    %s90 = scalar_lea.vmem [#allocation1], 3
    %91 = vst [vmem:[%s90] ss:$4 sm:$0xff] %v75
    %s92 = scalar_lea.vmem [#allocation1], 32
    %93 = vst [vmem:[%s92] ss:$4 sm:$0xff] %v70
    %s94 = scalar_lea.vmem [#allocation1], 33
    %95 = vst [vmem:[%s94] ss:$4 sm:$0xff] %v72
    %s96 = scalar_lea.vmem [#allocation1], 34
    %97 = vst [vmem:[%s96] ss:$4 sm:$0xff] %v74
    %s98 = scalar_lea.vmem [#allocation1], 35
    %99 = vst [vmem:[%s98] ss:$4 sm:$0xff] %v76
    %v100 = vld.sshfl [vmem:[#allocation1] sm:$0xff pattern:$0x73625140]
    %v101 = vld.sshfl [vmem:[#allocation1 + $0x8] sm:$0xff pattern:$0x73625140]
    %v102 = vld.sshfl [vmem:[#allocation1 + $0x10] sm:$0xff pattern:$0x73625140]
    %v103 = vld.sshfl [vmem:[#allocation1 + $0x18] sm:$0xff pattern:$0x73625140]
    %v104 = vld.sshfl [vmem:[#allocation1 + $0x20] sm:$0xff pattern:$0x73625140]
    %v105 = vld.sshfl [vmem:[#allocation1 + $0x28] sm:$0xff pattern:$0x73625140]
    %v106 = vld.sshfl [vmem:[#allocation1 + $0x30] sm:$0xff pattern:$0x73625140]
    %v114 = vpack.c.bf16 %v100, %v100
    %v115 = vpack.c.bf16 %v101, %v101
    %v116 = vpack.c.bf16 %v102, %v102
    %v117 = vpack.c.bf16 %v103, %v103
    %v118 = vpack.c.bf16 %v104, %v104
    %v119 = vpack.c.bf16 %v105, %v105
    %v120 = vpack.c.bf16 %v106, %v106
    %v121 = vld [vmem:[#allocation5] sm:$0xf]
    %v122 = vld [vmem:[#allocation5 + $0x4] sm:$0xf]
    %v123 = vld [vmem:[#allocation5 + $0x8] sm:$0xf]
    %v124 = vld [vmem:[#allocation5 + $0xc] sm:$0xf]
    %v125 = vld [vmem:[#allocation5 + $0x10] sm:$0xf]
    %v126 = vld [vmem:[#allocation5 + $0x14] sm:$0xf]
    %v127 = vld [vmem:[#allocation5 + $0x18] sm:$0xf]
    %v128 = vld [vmem:[#allocation5 + $0x1c] sm:$0xf]
    %v129 = vld [vmem:[#allocation5 + $0x20] sm:$0xf]
    %v130 = vld [vmem:[#allocation5 + $0x24] sm:$0xf]
    %v131 = vld [vmem:[#allocation5 + $0x28] sm:$0xf]
    %v132 = vld [vmem:[#allocation5 + $0x2c] sm:$0xf]
    %v133 = vld [vmem:[#allocation5 + $0x30] sm:$0xf]
    %v134 = vld [vmem:[#allocation5 + $0x34] sm:$0xf]
    %v135 = vld [vmem:[#allocation5 + $0x38] sm:$0xf]
    %v136 = vld [vmem:[#allocation5 + $0x3c] sm:$0xf]
    %v137 = vld [vmem:[#allocation5 + $0x40] sm:$0xf]
    %v138 = vld [vmem:[#allocation5 + $0x44] sm:$0xf]
    %v139 = vld [vmem:[#allocation5 + $0x48] sm:$0xf]
    %v140 = vld [vmem:[#allocation5 + $0x4c] sm:$0xf]
    %v141 = vld [vmem:[#allocation5 + $0x50] sm:$0xf]
    %v142 = vld [vmem:[#allocation5 + $0x54] sm:$0xf]
    %v143 = vld [vmem:[#allocation5 + $0x58] sm:$0xf]
    %v144 = vld [vmem:[#allocation5 + $0x5c] sm:$0xf]
    %v145 = vld [vmem:[#allocation5 + $0x60] sm:$0xf]
    %v146 = vld [vmem:[#allocation5 + $0x64] sm:$0xf]
    %v147 = vld [vmem:[#allocation5 + $0x68] sm:$0xf]
    %v148 = vld [vmem:[#allocation5 + $0x6c] sm:$0xf]
    %v149 = vld [vmem:[#allocation5 + $0x70] sm:$0xf]
    %v150 = vld [vmem:[#allocation5 + $0x74] sm:$0xf]
    %v151 = vld [vmem:[#allocation5 + $0x78] sm:$0xf]
    %v152 = vld [vmem:[#allocation5 + $0x7c] sm:$0xf]
    %v153 = vld [vmem:[#allocation5 + $0x80] sm:$0xf]
    %v154 = vld [vmem:[#allocation5 + $0x84] sm:$0xf]
    %v155 = vld [vmem:[#allocation5 + $0x88] sm:$0xf]
    %v156 = vld [vmem:[#allocation5 + $0x8c] sm:$0xf]
    %v157 = vld [vmem:[#allocation5 + $0x90] sm:$0xf]
    %v158 = vld [vmem:[#allocation5 + $0x94] sm:$0xf]
    %v159 = vld [vmem:[#allocation5 + $0x98] sm:$0xf]
    %v160 = vld [vmem:[#allocation5 + $0x9c] sm:$0xf]
    %v161 = vld [vmem:[#allocation5 + $0xa0] sm:$0xf]
    %v162 = vld [vmem:[#allocation5 + $0xa4] sm:$0xf]
    %v163 = vld [vmem:[#allocation5 + $0xa8] sm:$0xf]
    %v164 = vld [vmem:[#allocation5 + $0xac] sm:$0xf]
    %v165 = vld [vmem:[#allocation5 + $0xb0] sm:$0xf]
    %v166 = vld [vmem:[#allocation5 + $0xb4] sm:$0xf]
    %v167 = vld [vmem:[#allocation5 + $0xb8] sm:$0xf]
    %v168 = vld [vmem:[#allocation5 + $0xbc] sm:$0xf]
    %v169 = vld [vmem:[#allocation5 + $0xc0] sm:$0xf]
    %v170 = vld [vmem:[#allocation5 + $0xc4] sm:$0xf]
    %v171 = vld [vmem:[#allocation5 + $0xc8] sm:$0xf]
    %v172 = vld [vmem:[#allocation5 + $0xcc] sm:$0xf]
    %v173 = vld [vmem:[#allocation5 + $0xd0] sm:$0xf]
    %v174 = vld [vmem:[#allocation5 + $0xd4] sm:$0xf]
    %v175 = vld [vmem:[#allocation5 + $0xd8] sm:$0xf]
    %v176 = vld [vmem:[#allocation5 + $0xdc] sm:$0xf]
    %v177 = vld [vmem:[#allocation5 + $0xe0] sm:$0xf]
    %v178 = vld [vmem:[#allocation5 + $0xe4] sm:$0xf]
    %v179 = vld [vmem:[#allocation5 + $0xe8] sm:$0xf]
    %v180 = vld [vmem:[#allocation5 + $0xec] sm:$0xf]
    %v181 = vld [vmem:[#allocation5 + $0xf0] sm:$0xf]
    %v182 = vld [vmem:[#allocation5 + $0xf4] sm:$0xf]
    %v183 = vld [vmem:[#allocation5 + $0xf8] sm:$0xf]
    %v184 = vld [vmem:[#allocation5 + $0xfc] sm:$0xf]
    %v185 = vld [vmem:[#allocation5 + $0x100] sm:$0xf]
    %v186 = vld [vmem:[#allocation5 + $0x104] sm:$0xf]
    %v187 = vld [vmem:[#allocation5 + $0x108] sm:$0xf]
    %v188 = vld [vmem:[#allocation5 + $0x10c] sm:$0xf]
    %v189 = vld [vmem:[#allocation5 + $0x110] sm:$0xf]
    %v190 = vld [vmem:[#allocation5 + $0x114] sm:$0xf]
    %v191 = vld [vmem:[#allocation5 + $0x118] sm:$0xf]
    %v192 = vld [vmem:[#allocation5 + $0x11c] sm:$0xf]
    %v193 = vld [vmem:[#allocation5 + $0x120] sm:$0xf]
    %v194 = vld [vmem:[#allocation5 + $0x124] sm:$0xf]
    %v195 = vld [vmem:[#allocation5 + $0x128] sm:$0xf]
    %v196 = vld [vmem:[#allocation5 + $0x12c] sm:$0xf]
    %v197 = vld [vmem:[#allocation5 + $0x130] sm:$0xf]
    %v198 = vld [vmem:[#allocation5 + $0x134] sm:$0xf]
    %v199 = vld [vmem:[#allocation5 + $0x138] sm:$0xf]
    %v200 = vld [vmem:[#allocation5 + $0x13c] sm:$0xf]
    %v201 = vld [vmem:[#allocation5 + $0x140] sm:$0xf]
    %v202 = vld [vmem:[#allocation5 + $0x144] sm:$0xf]
    %v203 = vld [vmem:[#allocation5 + $0x148] sm:$0xf]
    %v204 = vld [vmem:[#allocation5 + $0x14c] sm:$0xf]
    %v205 = vld [vmem:[#allocation5 + $0x150] sm:$0xf]
    %v206 = vld [vmem:[#allocation5 + $0x154] sm:$0xf]
    %v207 = vld [vmem:[#allocation5 + $0x158] sm:$0xf]
    %v208 = vld [vmem:[#allocation5 + $0x15c] sm:$0xf]
    %v209 = vld [vmem:[#allocation5 + $0x160] sm:$0xf]
    %v210 = vld [vmem:[#allocation5 + $0x164] sm:$0xf]
    %v211 = vld [vmem:[#allocation5 + $0x168] sm:$0xf]
    %v212 = vld [vmem:[#allocation5 + $0x16c] sm:$0xf]
    %v213 = vld [vmem:[#allocation5 + $0x170] sm:$0xf]
    %v214 = vld [vmem:[#allocation5 + $0x174] sm:$0xf]
    %v215 = vld [vmem:[#allocation5 + $0x178] sm:$0xf]
    %v216 = vld [vmem:[#allocation5 + $0x17c] sm:$0xf]
    %v217 = vld [vmem:[#allocation5 + $0x180] sm:$0xf]
    %v218 = vld [vmem:[#allocation5 + $0x184] sm:$0xf]
    %v219 = vld [vmem:[%s2] sm:$0x1]
    %v221 = vperm.slane %v219, 0
    %v321 = vunpack.c.l.b16 %v121
    %v322 = vunpack.c.l.b16 %v122
    %v323 = vunpack.c.l.b16 %v123
    %v324 = vunpack.c.l.b16 %v124
    %v325 = vunpack.c.l.b16 %v125
    %v326 = vunpack.c.l.b16 %v126
    %v327 = vunpack.c.l.b16 %v127
    %v328 = vunpack.c.l.b16 %v128
    %v329 = vunpack.c.l.b16 %v129
    %v330 = vunpack.c.l.b16 %v130
    %v331 = vunpack.c.l.b16 %v131
    %v332 = vunpack.c.l.b16 %v132
    %v333 = vunpack.c.l.b16 %v133
    %v334 = vunpack.c.l.b16 %v134
    %v335 = vunpack.c.l.b16 %v135
    %v336 = vunpack.c.l.b16 %v136
    %v337 = vunpack.c.l.b16 %v137
    %v338 = vunpack.c.l.b16 %v138
    %v339 = vunpack.c.l.b16 %v139
    %v340 = vunpack.c.l.b16 %v140
    %v341 = vunpack.c.l.b16 %v141
    %v342 = vunpack.c.l.b16 %v142
    %v343 = vunpack.c.l.b16 %v143
    %v344 = vunpack.c.l.b16 %v144
    %v345 = vunpack.c.l.b16 %v145
    %v346 = vunpack.c.l.b16 %v146
    %v347 = vunpack.c.l.b16 %v147
    %v348 = vunpack.c.l.b16 %v148
    %v349 = vunpack.c.l.b16 %v149
    %v350 = vunpack.c.l.b16 %v150
    %v351 = vunpack.c.l.b16 %v151
    %v352 = vunpack.c.l.b16 %v152
    %v353 = vunpack.c.l.b16 %v153
    %v354 = vunpack.c.l.b16 %v154
    %v355 = vunpack.c.l.b16 %v155
    %v356 = vunpack.c.l.b16 %v156
    %v357 = vunpack.c.l.b16 %v157
    %v358 = vunpack.c.l.b16 %v158
    %v359 = vunpack.c.l.b16 %v159
    %v360 = vunpack.c.l.b16 %v160
    %v361 = vunpack.c.l.b16 %v161
    %v362 = vunpack.c.l.b16 %v162
    %v363 = vunpack.c.l.b16 %v163
    %v364 = vunpack.c.l.b16 %v164
    %v365 = vunpack.c.l.b16 %v165
    %v366 = vunpack.c.l.b16 %v166
    %v367 = vunpack.c.l.b16 %v167
    %v368 = vunpack.c.l.b16 %v168
    %v369 = vunpack.c.l.b16 %v169
    %v370 = vunpack.c.l.b16 %v170
    %v371 = vunpack.c.l.b16 %v171
    %v372 = vunpack.c.l.b16 %v172
    %v373 = vunpack.c.l.b16 %v173
    %v374 = vunpack.c.l.b16 %v174
    %v375 = vunpack.c.l.b16 %v175
    %v376 = vunpack.c.l.b16 %v176
    %v377 = vunpack.c.l.b16 %v177
    %v378 = vunpack.c.l.b16 %v178
    %v379 = vunpack.c.l.b16 %v179
    %v380 = vunpack.c.l.b16 %v180
    %v381 = vunpack.c.l.b16 %v181
    %v382 = vunpack.c.l.b16 %v182
    %v383 = vunpack.c.l.b16 %v183
    %v384 = vunpack.c.l.b16 %v184
    %v385 = vunpack.c.l.b16 %v185
    %v386 = vunpack.c.l.b16 %v186
    %v387 = vunpack.c.l.b16 %v187
    %v388 = vunpack.c.l.b16 %v188
    %v389 = vunpack.c.l.b16 %v189
    %v390 = vunpack.c.l.b16 %v190
    %v391 = vunpack.c.l.b16 %v191
    %v392 = vunpack.c.l.b16 %v192
    %v393 = vunpack.c.l.b16 %v193
    %v394 = vunpack.c.l.b16 %v194
    %v395 = vunpack.c.l.b16 %v195
    %v396 = vunpack.c.l.b16 %v196
    %v397 = vunpack.c.l.b16 %v197
    %v398 = vunpack.c.l.b16 %v198
    %v399 = vunpack.c.l.b16 %v199
    %v400 = vunpack.c.l.b16 %v200
    %v401 = vunpack.c.l.b16 %v201
    %v402 = vunpack.c.l.b16 %v202
    %v403 = vunpack.c.l.b16 %v203
    %v404 = vunpack.c.l.b16 %v204
    %v405 = vunpack.c.l.b16 %v205
    %v406 = vunpack.c.l.b16 %v206
    %v407 = vunpack.c.l.b16 %v207
    %v408 = vunpack.c.l.b16 %v208
    %v409 = vunpack.c.l.b16 %v209
    %v410 = vunpack.c.l.b16 %v210
    %v411 = vunpack.c.l.b16 %v211
    %v412 = vunpack.c.l.b16 %v212
    %v413 = vunpack.c.l.b16 %v213
    %v414 = vunpack.c.l.b16 %v214
    %v415 = vunpack.c.l.b16 %v215
    %v416 = vunpack.c.l.b16 %v216
    %v417 = vunpack.c.l.b16 %v217
    %v418 = vunpack.c.l.b16 %v218
    %v419 = vpack.c.b16 %v322, %v321
    %v420 = vpack.c.b16 %v324, %v323
    %v421 = vpack.c.b16 %v326, %v325
    %v422 = vpack.c.b16 %v328, %v327
    %v423 = vpack.c.b16 %v330, %v329
    %v424 = vpack.c.b16 %v332, %v331
    %v425 = vpack.c.b16 %v334, %v333
    %v426 = vpack.c.b16 %v336, %v335
    %v427 = vpack.c.b16 %v338, %v337
    %v428 = vpack.c.b16 %v340, %v339
    %v429 = vpack.c.b16 %v342, %v341
    %v430 = vpack.c.b16 %v344, %v343
    %v431 = vpack.c.b16 %v346, %v345
    %v432 = vpack.c.b16 %v348, %v347
    %v433 = vpack.c.b16 %v350, %v349
    %v434 = vpack.c.b16 %v352, %v351
    %v435 = vpack.c.b16 %v354, %v353
    %v436 = vpack.c.b16 %v356, %v355
    %v437 = vpack.c.b16 %v358, %v357
    %v438 = vpack.c.b16 %v360, %v359
    %v439 = vpack.c.b16 %v362, %v361
    %v440 = vpack.c.b16 %v364, %v363
    %v441 = vpack.c.b16 %v366, %v365
    %v442 = vpack.c.b16 %v368, %v367
    %v443 = vpack.c.b16 %v370, %v369
    %v444 = vpack.c.b16 %v372, %v371
    %v445 = vpack.c.b16 %v374, %v373
    %v446 = vpack.c.b16 %v376, %v375
    %v447 = vpack.c.b16 %v378, %v377
    %v448 = vpack.c.b16 %v380, %v379
    %v449 = vpack.c.b16 %v382, %v381
    %v450 = vpack.c.b16 %v384, %v383
    %v451 = vpack.c.b16 %v386, %v385
    %v452 = vpack.c.b16 %v388, %v387
    %v453 = vpack.c.b16 %v390, %v389
    %v454 = vpack.c.b16 %v392, %v391
    %v455 = vpack.c.b16 %v394, %v393
    %v456 = vpack.c.b16 %v396, %v395
    %v457 = vpack.c.b16 %v398, %v397
    %v458 = vpack.c.b16 %v400, %v399
    %v459 = vpack.c.b16 %v402, %v401
    %v460 = vpack.c.b16 %v404, %v403
    %v461 = vpack.c.b16 %v406, %v405
    %v462 = vpack.c.b16 %v408, %v407
    %v463 = vpack.c.b16 %v410, %v409
    %v464 = vpack.c.b16 %v412, %v411
    %v465 = vpack.c.b16 %v414, %v413
    %v466 = vpack.c.b16 %v416, %v415
    %v467 = vpack.c.b16 %v418, %v417
    %vm517 = vcmask 130048
    %v519 = vsel %vm517, %v120, 0
    %521 = vmatpush.bf16.msra.mxu0 %v426
    %522 = vmatpush.bf16.msra.mxu0 %v425
    %523 = vmatpush.bf16.msra.mxu0 %v424
    %524 = vmatpush.bf16.msra.mxu0 %v423
    %525 = vmatpush.bf16.msra.mxu0 %v422
    %526 = vmatpush.bf16.msra.mxu0 %v421
    %527 = vmatpush.bf16.msra.mxu0 %v420
    %528 = vmatpush.bf16.msra.mxu0 %v419
    %529 = vmatmul.bf16.gmra.mxu0 %v114
    %v530 = vpop.f32.mrf.mxu0
    %v531 = vadd.f32 %v221, %v530
    %v532 = vpop.f32.mrf.mxu0
    %533 = vdwg.mxu0
    %534 = vmatpush.bf16.msra.mxu0 %v434
    %535 = vmatpush.bf16.msra.mxu0 %v433
    %536 = vmatpush.bf16.msra.mxu0 %v432
    %537 = vmatpush.bf16.msra.mxu0 %v431
    %538 = vmatpush.bf16.msra.mxu0 %v430
    %539 = vmatpush.bf16.msra.mxu0 %v429
    %540 = vmatpush.bf16.msra.mxu0 %v428
    %541 = vmatpush.bf16.msra.mxu0 %v427
    %542 = vmatmul.bf16.gmra.mxu0 %v115
    %v543 = vpop.f32.mrf.mxu0
    %v544 = vadd.f32 %v531, %v543
    %v545 = vpop.f32.mrf.mxu0
    %546 = vdwg.mxu0
    %547 = vmatpush.bf16.msra.mxu0 %v442
    %548 = vmatpush.bf16.msra.mxu0 %v441
    %549 = vmatpush.bf16.msra.mxu0 %v440
    %550 = vmatpush.bf16.msra.mxu0 %v439
    %551 = vmatpush.bf16.msra.mxu0 %v438
    %552 = vmatpush.bf16.msra.mxu0 %v437
    %553 = vmatpush.bf16.msra.mxu0 %v436
    %554 = vmatpush.bf16.msra.mxu0 %v435
    %555 = vmatmul.bf16.gmra.mxu0 %v116
    %v556 = vpop.f32.mrf.mxu0
    %v557 = vadd.f32 %v544, %v556
    %v558 = vpop.f32.mrf.mxu0
    %559 = vdwg.mxu0
    %560 = vmatpush.bf16.msra.mxu0 %v450
    %561 = vmatpush.bf16.msra.mxu0 %v449
    %562 = vmatpush.bf16.msra.mxu0 %v448
    %563 = vmatpush.bf16.msra.mxu0 %v447
    %564 = vmatpush.bf16.msra.mxu0 %v446
    %565 = vmatpush.bf16.msra.mxu0 %v445
    %566 = vmatpush.bf16.msra.mxu0 %v444
    %567 = vmatpush.bf16.msra.mxu0 %v443
    %568 = vmatmul.bf16.gmra.mxu0 %v117
    %v569 = vpop.f32.mrf.mxu0
    %v570 = vadd.f32 %v557, %v569
    %v571 = vpop.f32.mrf.mxu0
    %572 = vdwg.mxu0
    %573 = vmatpush.bf16.msra.mxu0 %v458
    %574 = vmatpush.bf16.msra.mxu0 %v457
    %575 = vmatpush.bf16.msra.mxu0 %v456
    %576 = vmatpush.bf16.msra.mxu0 %v455
    %577 = vmatpush.bf16.msra.mxu0 %v454
    %578 = vmatpush.bf16.msra.mxu0 %v453
    %579 = vmatpush.bf16.msra.mxu0 %v452
    %580 = vmatpush.bf16.msra.mxu0 %v451
    %581 = vmatmul.bf16.gmra.mxu0 %v118
    %v582 = vpop.f32.mrf.mxu0
    %v583 = vadd.f32 %v570, %v582
    %v584 = vpop.f32.mrf.mxu0
    %585 = vdwg.mxu0
    %586 = vmatpush.bf16.msra.mxu0 %v466
    %587 = vmatpush.bf16.msra.mxu0 %v465
    %588 = vmatpush.bf16.msra.mxu0 %v464
    %589 = vmatpush.bf16.msra.mxu0 %v463
    %590 = vmatpush.bf16.msra.mxu0 %v462
    %591 = vmatpush.bf16.msra.mxu0 %v461
    %592 = vmatpush.bf16.msra.mxu0 %v460
    %593 = vmatpush.bf16.msra.mxu0 %v459
    %594 = vmatmul.bf16.gmra.mxu0 %v119
    %v595 = vpop.f32.mrf.mxu0
    %v596 = vadd.f32 %v583, %v595
    %v597 = vpop.f32.mrf.mxu0
    %598 = vdwg.mxu0
    %599 = vmatpush.bf16.msra.mxu0 0
    %600 = vmatpush.bf16.msra.mxu0 0
    %601 = vmatpush.bf16.msra.mxu0 0
    %602 = vmatpush.bf16.msra.mxu0 0
    %603 = vmatpush.bf16.msra.mxu0 0
    %604 = vmatpush.bf16.msra.mxu0 0
    %605 = vmatpush.bf16.msra.mxu0 0
    %606 = vmatpush.bf16.msra.mxu0 %v467
    %607 = vmatmul.bf16.gmra.mxu0 %v519
    %v608 = vpop.f32.mrf.mxu0
    %v609 = vadd.f32 %v596, %v608
    %v610 = vpop.f32.mrf.mxu0
    %611 = vdwg.mxu0
    %v612 = vmax.f32 %v609, 0.0
    %v613 = vpack.c.bf16 %v612, %v612
    %v614 = vld [vmem:[#allocation7] sm:$0xf]
    %v615 = vld [vmem:[#allocation7 + $0x4] sm:$0xf]
    %v616 = vld [vmem:[#allocation7 + $0x8] sm:$0xf]
    %v617 = vld [vmem:[#allocation7 + $0xc] sm:$0xf]
    %v618 = vld [vmem:[#allocation7 + $0x10] sm:$0xf]
    %v619 = vld [vmem:[#allocation7 + $0x14] sm:$0xf]
    %v620 = vld [vmem:[#allocation7 + $0x18] sm:$0xf]
    %v621 = vld [vmem:[#allocation7 + $0x1c] sm:$0xf]
    %v622 = vld [vmem:[#allocation7 + $0x20] sm:$0xf]
    %v623 = vld [vmem:[#allocation7 + $0x24] sm:$0xf]
    %v624 = vld [vmem:[#allocation7 + $0x28] sm:$0xf]
    %v625 = vld [vmem:[#allocation7 + $0x2c] sm:$0xf]
    %v626 = vld [vmem:[#allocation7 + $0x30] sm:$0xf]
    %v627 = vld [vmem:[#allocation7 + $0x34] sm:$0xf]
    %v628 = vld [vmem:[#allocation7 + $0x38] sm:$0xf]
    %v629 = vld [vmem:[#allocation7 + $0x3c] sm:$0xf]
    %v630 = vld [vmem:[%s4] sm:$0x1]
    %v632 = vperm.slane %v630, 0
    %v650 = vunpack.c.l.b16 %v614
    %v651 = vunpack.c.l.b16 %v615
    %v652 = vunpack.c.l.b16 %v616
    %v653 = vunpack.c.l.b16 %v617
    %v654 = vunpack.c.l.b16 %v618
    %v655 = vunpack.c.l.b16 %v619
    %v656 = vunpack.c.l.b16 %v620
    %v657 = vunpack.c.l.b16 %v621
    %v658 = vunpack.c.l.b16 %v622
    %v659 = vunpack.c.l.b16 %v623
    %v660 = vunpack.c.l.b16 %v624
    %v661 = vunpack.c.l.b16 %v625
    %v662 = vunpack.c.l.b16 %v626
    %v663 = vunpack.c.l.b16 %v627
    %v664 = vunpack.c.l.b16 %v628
    %v665 = vunpack.c.l.b16 %v629
    %v666 = vpack.c.b16 %v651, %v650
    %v667 = vpack.c.b16 %v653, %v652
    %v668 = vpack.c.b16 %v655, %v654
    %v669 = vpack.c.b16 %v657, %v656
    %v670 = vpack.c.b16 %v659, %v658
    %v671 = vpack.c.b16 %v661, %v660
    %v672 = vpack.c.b16 %v663, %v662
    %v673 = vpack.c.b16 %v665, %v664
    %682 = vmatpush.bf16.msra.mxu0 %v673
    %683 = vmatpush.bf16.msra.mxu0 %v672
    %684 = vmatpush.bf16.msra.mxu0 %v671
    %685 = vmatpush.bf16.msra.mxu0 %v670
    %686 = vmatpush.bf16.msra.mxu0 %v669
    %687 = vmatpush.bf16.msra.mxu0 %v668
    %688 = vmatpush.bf16.msra.mxu0 %v667
    %689 = vmatpush.bf16.msra.mxu0 %v666
    %690 = vmatmul.bf16.gmra.mxu0 %v613
    %v691 = vpop.f32.mrf.mxu0
    %v692 = vadd.f32 %v632, %v691
    %v693 = vpop.f32.mrf.mxu0
    %694 = vdwg.mxu0
    %v695 = vmul.f32 %v692, 1.442695
    %v696 = vpow.pop %v695
    %697 = vst [vmem:[#allocation8] sm:$0xff] %v696
    // Predicated region
    $region34: #{tpu_custom_call.1} parent=1 // pred_check
      _
    $region35: #{tpu_custom_call.1} parent=1 // pred_check_branch
      %699 = sbr.rel (0) target = $region37
    $region36: #{tpu_custom_call.1} parent=1 // pred_region
      %701 = vsyncadd [#allocation4], 96
      %s702 = sshll.u32 [#allocation8], 4
      %s703 = int_to_ptr.vmem [resolvable:$true] %s702
      %s704 = sshll.u32 %s5, 4
      %s705 = int_to_ptr.hbm [resolvable:$true] %s704
      %710 = dma.vmem_to_hbm [thread:$0]  %s703, 32, %s705, [#allocation4], 32, 32, 2
    $region37: #{tpu_custom_call.1} parent=1 // pred_fallthru
      _
    // Predicated region
    $region38: #{tpu_custom_call.1} parent=1 // pred_check
      _
    $region39: #{tpu_custom_call.1} parent=1 // pred_check_branch
      %712 = sbr.rel (0) target = $region41
    $region40: #{tpu_custom_call.1} parent=1 // pred_region
      %714 = dma.done [#allocation4], 128
    $region41: #{tpu_custom_call.1} parent=1 // pred_fallthru
      _
    %715 = vsyncpa [#allocation3], 1
    %716 = vsyncpa [#allocation6], 1
    %717 = vsyncpa [#allocation4], 1

</llo_original>
